<compile_context>
chip_gen: v6e
topology: v6e:2x2x1
jax: 0.10.0
libtpu: 0.0.40
codegen_flags: <defaults>
</compile_context>

<pallas_src>
import math

import jax
import jax.numpy as jnp
from jax.experimental import pallas as pl
from jax.experimental.pallas import tpu as pltpu


def _build_pe(d_model: int, max_len: int = 10000, dtype=jnp.float32) -> jnp.ndarray:
    """Sinusoidal positional-encoding buffer, shape (max_len, d_model).

    Built in f32 for accuracy, stored in the activation dtype so the kernel's DMA
    and VPU add never mix dtypes.  Odd d_model handled (cos half uses floor(d/2)).
    """
    position = jnp.arange(0, max_len, dtype=jnp.float32)[:, None]          # (max_len, 1)
    div_term = jnp.exp(jnp.arange(0, d_model, 2, dtype=jnp.float32)
                       * (-math.log(10000.0) / d_model))                   # (ceil(d/2),)
    angles = position * div_term                                           # (max_len, ceil(d/2))
    pe = jnp.zeros((max_len, d_model), dtype=jnp.float32)
    pe = pe.at[:, 0::2].set(jnp.sin(angles))
    pe = pe.at[:, 1::2].set(jnp.cos(angles[:, : d_model // 2]))            # odd-d safe
    return pe.astype(dtype)


def _add_pe_kernel(x_ref, pe_ref, o_ref):
    # Pure VPU elementwise add with an in-kernel broadcast of pe over the batch
    # axis:  x/o block (ts, tb, Dv), pe block (ts, 1, Dv).
    o_ref[...] = x_ref[...] + pe_ref[...]


def _block_budget_bytes() -> int:
    """Per-block byte budget, generation-aware.

    v5e-class chips (16 MiB scoped-VMEM default): 2 MiB blocks keep
    double-buffered in/out/pe comfortably under the default.  v6e / v7x
    (32 MiB scoped default, 1.4-3.2 TB/s HBM) amortize the fixed per-grid-step
    overhead better with 4 MiB blocks while still fitting the default limit.
    """
    try:
        kind = jax.devices()[0].device_kind.lower()
    except Exception:
        return 2 * 1024 * 1024
    if ("v2" in kind or "v3" in kind or "v4" in kind
            or "v5 lite" in kind or "v5e" in kind or "v5lite" in kind):
        return 2 * 1024 * 1024
    return 4 * 1024 * 1024


def _choose_tiles(S: int, Bv: int, Dv: int, itemsize: int, budget: int):
    """Pick (ts, tb): rows-per-block along S and the batch tile.

    tb == Bv means no batch split (single S grid axis).  Blocks respect the
    (8,128) rule (last-two block dims are either full dims or multiples of 8),
    stay within `budget`, and keep >= 2 grid steps over S when S > 8 so the grid
    can shard across v7x's two TensorCores.
    """
    lane_bytes = Dv * itemsize
    full_row = Bv * lane_bytes
    if Bv <= 8 or 8 * full_row <= budget:
        tb = Bv                                             # whole batch per block
    else:
        tb = min(Bv, max(8, ((budget // (8 * lane_bytes)) // 8) * 8))
    row_bytes = max(tb * lane_bytes, 1)

    if S <= 8:
        ts = S                                              # whole-dim block (always legal)
    else:
        ts = min(S, max(1, budget // row_bytes))
        ts = max(8, (ts // 8) * 8)
        half = ((((S + 1) // 2) + 7) // 8) * 8              # >= 2 steps over S
        ts = min(ts, max(8, half))
    return ts, tb


def positional_encoding_forward(x: jnp.ndarray, pe: jnp.ndarray) -> jnp.ndarray:
    """x: (S, B, D); pe: (max_len, D) precomputed buffer. Returns x + pe[:S, None, :]."""
    S, B, D = x.shape
    if pe.shape[0] < S:
        raise ValueError(f"pe buffer ({pe.shape[0]} rows) shorter than sequence ({S})")
    if pe.dtype != x.dtype:
        pe = pe.astype(x.dtype)        # keep DMA + add in the activation dtype
    itemsize = jnp.dtype(x.dtype).itemsize

    # ---- Pick a lane-dense 3-D view (S, Bv, Dv) ---------------------------------
    if D < 128 and 128 % D == 0 and B % (128 // D) == 0:
        # Fold k batch elements into the lane axis: (S, B, D) -> (S, B//k, 128).
        # Free row-major reshape for x; pe[:S] is tiled k times along lanes (tiny).
        k = 128 // D
        Bv, Dv = B // k, 128
        xv = x.reshape(S, Bv, Dv)
        pev = jnp.tile(pe[:S], (1, k))                       # (S, 128)
        pe_rows = S
    else:
        # D % 128 == 0 (already lane-dense) or a non-foldable narrow D.
        # TODO(synk): for narrow, non-foldable D the op is lane-sparse; prefer
        # fusing this add into the neighbouring kernel at real call sites.
        Bv, Dv = B, D
        xv = x
        pev = pe                                             # full buffer; [:S] via index_map
        pe_rows = pe.shape[0]
    pe3 = pev.reshape(pe_rows, 1, Dv)                        # free reshape

    budget = _block_budget_bytes()
    ts, tb = _choose_tiles(S, Bv, Dv, itemsize, budget)

    # Bandwidth-bound: read x + pe (once per S row), write out.
    cost = pl.CostEstimate(
        flops=x.size,
        transcendentals=0,
        bytes_accessed=2 * x.size * itemsize + S * Dv * itemsize,
    )

    # Safety guard (resource, not numeric): the 8-row floor can exceed the budget
    # for extreme B*D; raise the scoped-VMEM limit explicitly in that corner.
    block_bytes = ts * tb * Dv * itemsize
    in_flight = 2 * (2 * block_bytes + ts * Dv * itemsize)   # dbl-buffered x/out + pe
    compiler_kwargs = {}
    if in_flight > 28 * 1024 * 1024:
        compiler_kwargs["vmem_limit_bytes"] = min(in_flight + 4 * 1024 * 1024,
                                                  48 * 1024 * 1024)

    if tb == Bv:
        # Single grid axis over S: one contiguous (ts, Bv, Dv) slab per step.
        grid = (pl.cdiv(S, ts),)
        in_specs = [
            pl.BlockSpec((ts, Bv, Dv), lambda i: (i, 0, 0)),     # x row tile i
            pl.BlockSpec((ts, 1, Dv), lambda i: (i, 0, 0)),      # pe[:S] via index_map
        ]
        out_spec = pl.BlockSpec((ts, Bv, Dv), lambda i: (i, 0, 0))
        dims = ("parallel",)
    else:
        # Batch split (huge B*D per row): pe's block index ignores the inner batch
        # axis, so it stays VMEM-resident across the inner loop.
        grid = (pl.cdiv(S, ts), pl.cdiv(Bv, tb))
        in_specs = [
            pl.BlockSpec((ts, tb, Dv), lambda i, j: (i, j, 0)),
            pl.BlockSpec((ts, 1, Dv), lambda i, j: (i, 0, 0)),
        ]
        out_spec = pl.BlockSpec((ts, tb, Dv), lambda i, j: (i, j, 0))
        dims = ("parallel", "parallel")

    out = pl.pallas_call(
        _add_pe_kernel,
        out_shape=jax.ShapeDtypeStruct((S, Bv, Dv), x.dtype),
        grid_spec=pltpu.PrefetchScalarGridSpec(
            num_scalar_prefetch=0,
            grid=grid,
            in_specs=in_specs,
            out_specs=out_spec,
        ),
        compiler_params=pltpu.CompilerParams(
            dimension_semantics=dims, **compiler_kwargs),
        cost_estimate=cost,
    )(xv, pe3)
    return out.reshape(S, B, D)


if __name__ == "__main__":
    key = jax.random.PRNGKey(0)
    k1, k2, k3, k4 = jax.random.split(key, 4)
    max_len = 64  # small buffer for the demo; semantics identical to max_len=10000

    # Case 1: the module's small demo shape (S=8, B=2, D=32) — plain 3-D path.
    S, B, D = 8, 2, 32
    x = jax.random.normal(k1, (S, B, D), dtype=jnp.float32)
    pe = _build_pe(D, max_len=max_len, dtype=x.dtype)
    out = jax.block_until_ready(positional_encoding_forward(x, pe))
    assert out.shape == (S, B, D)
    assert jnp.allclose(out, x + pe[:S][:, None, :], atol=1e-6, rtol=1e-6)

    # Case 2: lane-dense d_model (D % 128 == 0), S tiled into 2 grid steps.
    S2, B2, D2 = 16, 2, 128
    x2 = jax.random.normal(k2, (S2, B2, D2), dtype=jnp.float32)
    pe2 = _build_pe(D2, max_len=max_len, dtype=x2.dtype)
    out2 = jax.block_until_ready(positional_encoding_forward(x2, pe2))
    assert out2.shape == (S2, B2, D2)
    assert jnp.allclose(out2, x2 + pe2[:S2][:, None, :], atol=1e-6, rtol=1e-6)

    # Case 3: lane-folded narrow D (D=32, B=8 -> view (S, 2, 128)).
    S3, B3, D3 = 8, 8, 32
    x3 = jax.random.normal(k3, (S3, B3, D3), dtype=jnp.float32)
    pe3 = _build_pe(D3, max_len=max_len, dtype=x3.dtype)
    out3 = jax.block_until_ready(positional_encoding_forward(x3, pe3))
    assert out3.shape == (S3, B3, D3)
    assert jnp.allclose(out3, x3 + pe3[:S3][:, None, :], atol=1e-6, rtol=1e-6)

    # Case 4: partial tail block along S (S=20, ts=16 -> blocks of 16 and 4).
    S4, B4, D4 = 20, 2, 128
    x4 = jax.random.normal(k4, (S4, B4, D4), dtype=jnp.float32)
    pe4 = _build_pe(D4, max_len=max_len, dtype=x4.dtype)
    out4 = jax.block_until_ready(positional_encoding_forward(x4, pe4))
    assert out4.shape == (S4, B4, D4)
    assert jnp.allclose(out4, x4 + pe4[:S4][:, None, :], atol=1e-6, rtol=1e-6)

    print("KERNEL_OK")
</pallas_src>

<mosaic_0001>
module attributes {stable_mosaic.version = 11 : i64} {
  func.func @_add_pe_kernel(%arg0: i32, %arg1: memref<8x2x32xf32, #tpu.memory_space<vmem>>, %arg2: memref<8x1x32xf32, #tpu.memory_space<vmem>>, %arg3: memref<8x2x32xf32, #tpu.memory_space<vmem>>) attributes {dimension_semantics = [#tpu.dimension_semantics<parallel>], iteration_bounds = array<i64: 1>, scalar_prefetch = 0 : i64, scratch_operands = 0 : i64, tpu.core_type = #tpu.core_type<tc>, window_params = [{transform_indices = @transform_0, window_bounds = array<i64: 8, 2, 32>}, {transform_indices = @transform_1, window_bounds = array<i64: 8, 1, 32>}, {transform_indices = @transform_2, window_bounds = array<i64: 8, 2, 32>}]} {
    %c0 = arith.constant 0 : index
    %c0_0 = arith.constant 0 : index
    %c0_1 = arith.constant 0 : index
    %0 = vector.load %arg1[%c0, %c0_0, %c0_1] : memref<8x2x32xf32, #tpu.memory_space<vmem>>, vector<8x2x32xf32>
    %c0_2 = arith.constant 0 : index
    %c0_3 = arith.constant 0 : index
    %c0_4 = arith.constant 0 : index
    %1 = vector.load %arg2[%c0_2, %c0_3, %c0_4] : memref<8x1x32xf32, #tpu.memory_space<vmem>>, vector<8x1x32xf32>
    %2 = vector.broadcast %1 : vector<8x1x32xf32> to vector<8x2x32xf32>
    %3 = arith.addf %0, %2 : vector<8x2x32xf32>
    %c0_5 = arith.constant 0 : index
    %c0_6 = arith.constant 0 : index
    %c0_7 = arith.constant 0 : index
    %4 = vector.load %arg3[%c0_5, %c0_6, %c0_7] : memref<8x2x32xf32, #tpu.memory_space<vmem>>, vector<8x2x32xf32>
    tpu.vector_store %arg3[%c0_5, %c0_6, %c0_7], %3 {strides = array<i32>} : memref<8x2x32xf32, #tpu.memory_space<vmem>>, vector<8x2x32xf32>,
    return
  }
  func.func @transform_0(%arg0: i32) -> (i32, i32, i32) {
    %c0_i32 = arith.constant 0 : i32
    %c0_i32_0 = arith.constant 0 : i32
    %c0_i32_1 = arith.constant 0 : i32
    return %arg0, %c0_i32, %c0_i32_0 : i32, i32, i32
  }
  func.func @transform_1(%arg0: i32) -> (i32, i32, i32) {
    %c0_i32 = arith.constant 0 : i32
    %c0_i32_0 = arith.constant 0 : i32
    %c0_i32_1 = arith.constant 0 : i32
    return %arg0, %c0_i32, %c0_i32_0 : i32, i32, i32
  }
  func.func @transform_2(%arg0: i32) -> (i32, i32, i32) {
    %c0_i32 = arith.constant 0 : i32
    %c0_i32_0 = arith.constant 0 : i32
    %c0_i32_1 = arith.constant 0 : i32
    return %arg0, %c0_i32, %c0_i32_0 : i32, i32, i32
  }
}

</mosaic_0001>

<llo_original>
// kernel: tpu_custom_call.1
$region0: #{tpu_custom_call.1}
  #allocation0 [shape = 'u32[]', space=smem, size = 0x4, offset = 0x4, fixed_abs, tag = 'smem constant byte address 0x4 - core index']
  #allocation1 [shape = 'u32[144,128]{1,0:T(1,128)}', space=vmem, size = 0x12000, scoped, tag = 'internal scratch']
  %s0 = inlined_call_operand.vmem [shape: f32[8,2,32], index: 0, kind: input, shape index: {}]
  %s1 = inlined_call_operand.vmem [shape: f32[64,1,32], index: 1, kind: input, shape index: {}]
  %s2 = inlined_call_operand.hbm [shape: f32[8,2,32], index: 2, kind: output, shape index: {}]
  %s3 = sld [smem:[#allocation0]]
  $region18: #{tpu_custom_call.1} parent=0
    _
  %s5 = ssub.s32 1, %s3
  %s6 = scalar_select 0, %s5, %s3
  $region1: #{tpu_custom_call.1} parent=0
    #allocation2 [shape = 'u8[8192]{0}', space=vmem, size = 0x2000, scoped, tag = 'output window, operand 0, single buffered']
    #allocation3 [shape = 's32[1]{0}', space=sflag, size = 0x4, scoped, tag = 'scoped memory for tpu_custom_call.1']
    %7 = vsyncpa [#allocation3], 0
    // Predicated region
    $region2: #{tpu_custom_call.1} parent=1 // pred_check
      _
    $region3: #{tpu_custom_call.1} parent=1 // pred_check_branch
      %9 = sbr.rel (0) target = $region5
    $region4: #{tpu_custom_call.1} parent=1 // pred_region
      _
    $region5: #{tpu_custom_call.1} parent=1 // pred_fallthru
      _
    // Predicated region
    $region6: #{tpu_custom_call.1} parent=1 // pred_check
      _
    $region7: #{tpu_custom_call.1} parent=1 // pred_check_branch
      %11 = sbr.rel (0) target = $region9
    $region8: #{tpu_custom_call.1} parent=1 // pred_region
      _
    $region9: #{tpu_custom_call.1} parent=1 // pred_fallthru
      _
    %v12 = vld [vmem:[%s0] sm:$0x3]
    %v13 = vld [vmem:[%s0 + $0x2] sm:$0x3]
    %v14 = vld [vmem:[%s0 + $0x4] sm:$0x3]
    %v15 = vld [vmem:[%s0 + $0x6] sm:$0x3]
    %v16 = vld [vmem:[%s0 + $0x8] sm:$0x3]
    %v17 = vld [vmem:[%s0 + $0xa] sm:$0x3]
    %v18 = vld [vmem:[%s0 + $0xc] sm:$0x3]
    %v19 = vld [vmem:[%s0 + $0xe] sm:$0x3]
    %v20 = vld [vmem:[%s1] sm:$0x1]
    %v21 = vld [vmem:[%s1 + $0x1] sm:$0x1]
    %v22 = vld [vmem:[%s1 + $0x2] sm:$0x1]
    %v23 = vld [vmem:[%s1 + $0x3] sm:$0x1]
    %v24 = vld [vmem:[%s1 + $0x4] sm:$0x1]
    %v25 = vld [vmem:[%s1 + $0x5] sm:$0x1]
    %v26 = vld [vmem:[%s1 + $0x6] sm:$0x1]
    %v27 = vld [vmem:[%s1 + $0x7] sm:$0x1]
    %v36 = vlaneseq
    %v37 = vshrl.u32 %v36, 7
    %v38 = vsub.s32 0, %v37
    %v39 = vrot.slane %v20, %v38
    %v40 = vlaneseq
    %v41 = vshrl.u32 %v40, 7
    %v42 = vsub.s32 0, %v41
    %v43 = vrot.slane %v21, %v42
    %v44 = vlaneseq
    %v45 = vshrl.u32 %v44, 7
    %v46 = vsub.s32 0, %v45
    %v47 = vrot.slane %v22, %v46
    %v48 = vlaneseq
    %v49 = vshrl.u32 %v48, 7
    %v50 = vsub.s32 0, %v49
    %v51 = vrot.slane %v23, %v50
    %v52 = vlaneseq
    %v53 = vshrl.u32 %v52, 7
    %v54 = vsub.s32 0, %v53
    %v55 = vrot.slane %v24, %v54
    %v56 = vlaneseq
    %v57 = vshrl.u32 %v56, 7
    %v58 = vsub.s32 0, %v57
    %v59 = vrot.slane %v25, %v58
    %v60 = vlaneseq
    %v61 = vshrl.u32 %v60, 7
    %v62 = vsub.s32 0, %v61
    %v63 = vrot.slane %v26, %v62
    %v64 = vlaneseq
    %v65 = vshrl.u32 %v64, 7
    %v66 = vsub.s32 0, %v65
    %v67 = vrot.slane %v27, %v66
    %v76 = vadd.f32 %v12, %v39
    %v77 = vadd.f32 %v13, %v43
    %v78 = vadd.f32 %v14, %v47
    %v79 = vadd.f32 %v15, %v51
    %v80 = vadd.f32 %v16, %v55
    %v81 = vadd.f32 %v17, %v59
    %v82 = vadd.f32 %v18, %v63
    %v83 = vadd.f32 %v19, %v67
    %vm84 = vcmask 254976
    %85 = vst.msk [vmem:[#allocation2] sm:$0x3] %vm84, %v76
    %86 = vst.msk [vmem:[#allocation2 + $0x2] sm:$0x3] %vm84, %v77
    %87 = vst.msk [vmem:[#allocation2 + $0x4] sm:$0x3] %vm84, %v78
    %88 = vst.msk [vmem:[#allocation2 + $0x6] sm:$0x3] %vm84, %v79
    %89 = vst.msk [vmem:[#allocation2 + $0x8] sm:$0x3] %vm84, %v80
    %90 = vst.msk [vmem:[#allocation2 + $0xa] sm:$0x3] %vm84, %v81
    %91 = vst.msk [vmem:[#allocation2 + $0xc] sm:$0x3] %vm84, %v82
    %92 = vst.msk [vmem:[#allocation2 + $0xe] sm:$0x3] %vm84, %v83
    // Predicated region
    $region10: #{tpu_custom_call.1} parent=1 // pred_check
      _
    $region11: #{tpu_custom_call.1} parent=1 // pred_check_branch
      %94 = sbr.rel (0) target = $region13
    $region12: #{tpu_custom_call.1} parent=1 // pred_region
      %s96 = ssub.s32 256, 256
      %97 = vsyncadd [#allocation3], %s96
      %s98 = sshll.u32 [#allocation2], 4
      %s99 = int_to_ptr.vmem [resolvable:$true] %s98
      %104 = dma.vmem_to_hbm [thread:$0]  %s99, 256, %s2, [#allocation3], 32, 32, 2
    $region13: #{tpu_custom_call.1} parent=1 // pred_fallthru
      _
    // Predicated region
    $region14: #{tpu_custom_call.1} parent=1 // pred_check
      _
    $region15: #{tpu_custom_call.1} parent=1 // pred_check_branch
      %106 = sbr.rel (0) target = $region17
    $region16: #{tpu_custom_call.1} parent=1 // pred_region
      %107 = dma.done [#allocation3], 256
    $region17: #{tpu_custom_call.1} parent=1 // pred_fallthru
      _
    %108 = vsyncpa [#allocation3], 1

</llo_original>
